<compile_context>
chip_gen: v6e
topology: v6e:2x2x1
jax: 0.10.0
libtpu: 0.0.40
codegen_flags: <defaults>
</compile_context>

<pallas_src>
import numpy as np
import jax
import jax.numpy as jnp
from jax import lax
from jax.experimental import pallas as pl
from jax.experimental.pallas import tpu as pltpu


# ---------------------------------------------------------------------------
# Fused ECA kernel: avg-pool -> channel conv1d -> sigmoid -> scale
# ---------------------------------------------------------------------------
def _make_eca_kernel(c, hw, nb, k_size):
    inv_hw = 1.0 / float(hw)
    pad = (k_size - 1) // 2

    def kernel(w_ref, x_ref, o_ref, gate_ref):
        # w_ref:    (k,)        f32, SMEM (conv taps)
        # x_ref:    (Nb, C, HW) input block (lane-dense minor dim)
        # o_ref:    (Nb, C, HW) output block
        # gate_ref: (Nb, C, 1)  f32 VMEM scratch (per-channel gates)
        x = x_ref[...]

        # 1) Spatial mean -- reduce first, f32 accumulation (lane-axis reduce).
        mean = jnp.sum(x, axis=-1, keepdims=True,
                       dtype=jnp.float32) * inv_hw                 # (Nb, C, 1)

        # 2) k-tap zero-padded conv over channels, applied to the tiny mean:
        #    k shifted multiply-adds via sublane rolls + boundary masks.
        ch = lax.broadcasted_iota(jnp.int32, (c, 1), 0)             # (C, 1)
        for n in range(nb):                                          # static
            m = mean[n]                                              # (C, 1)
            y = w_ref[pad] * m                                       # d == 0 tap
            for j in range(k_size):                                  # static
                d = j - pad
                if d == 0:
                    continue
                rolled = pltpu.roll(m, shift=(-d) % c, axis=0)       # circular
                valid = (ch + d >= 0) & (ch + d < c)                 # zero-pad
                y = y + w_ref[j] * jnp.where(valid, rolled, 0.0)
            gate_ref[n] = jax.nn.sigmoid(y)                          # (C, 1)

        # 3) Scale: gate multiply in the activation dtype (bf16-friendly).
        o_ref[...] = x * gate_ref[...].astype(o_ref.dtype)

    return kernel


def _pick_batch_block(n, bytes_per_sample, target_bytes=2 << 20):
    """Nb samples per grid step, ~target-sized blocks, Nb divides N,
    and keep >= 2 grid steps when possible (v7x megacore)."""
    nb = int(max(1, min(n, target_bytes // max(bytes_per_sample, 1))))
    while n % nb:
        nb -= 1
    if n // nb < 2 and n >= 2:
        nb = n // 2
        while n % nb:
            nb -= 1
    return nb


# ---------------------------------------------------------------------------
# Wrapper: NCHW in / NCHW out
# ---------------------------------------------------------------------------
def eca_forward(x_nchw, conv_w, k_size=3):
    """ECA forward. x_nchw: (N, C, H, W). conv_w: (1, 1, k) Conv1d weight."""
    n, c, h, w = x_nchw.shape
    hw = h * w
    itemsize = jnp.dtype(x_nchw.dtype).itemsize
    taps = conv_w.reshape(-1).astype(jnp.float32)                   # (k,) SMEM

    nb = _pick_batch_block(n, c * hw * itemsize)
    x3 = x_nchw.reshape(n, c, hw)                                   # pure reshape

    # VMEM budget: in + out blocks, double-buffered, plus slack.
    block_bytes = nb * c * hw * itemsize
    vmem_limit = int(min(max(4 * block_bytes + (1 << 20), 16 << 20), 48 << 20))

    # Memory-bound cost model (reduce + scale + tiny conv), no C^2 term.
    cost = pl.CostEstimate(
        flops=int(n * (3 * c * hw + 2 * c * k_size)),
        transcendentals=int(n * c),
        bytes_accessed=int(2 * n * c * hw * itemsize + 4 * k_size),
    )

    kernel = _make_eca_kernel(c, hw, nb, k_size)

    out = pl.pallas_call(
        kernel,
        out_shape=jax.ShapeDtypeStruct((n, c, hw), x_nchw.dtype),
        grid=(n // nb,),
        in_specs=[
            pl.BlockSpec(memory_space=pltpu.MemorySpace.SMEM),      # conv taps
            pl.BlockSpec((nb, c, hw), lambda i: (i, 0, 0)),         # x block
        ],
        out_specs=pl.BlockSpec((nb, c, hw), lambda i: (i, 0, 0)),
        scratch_shapes=[pltpu.VMEM((nb, c, 1), jnp.float32)],       # gates
        compiler_params=pltpu.CompilerParams(
            dimension_semantics=("parallel",),
            vmem_limit_bytes=vmem_limit),
        cost_estimate=cost,
    )(taps, x3)

    return out.reshape(n, c, h, w)


# ---------------------------------------------------------------------------
# Pure-JAX reference (correctness check only)
# ---------------------------------------------------------------------------
def eca_forward_ref(x, conv_w):
    n, c, h, w = x.shape
    k = conv_w.shape[-1]
    pad = (k - 1) // 2
    wf = conv_w.reshape(-1)
    mean = x.mean(axis=(2, 3))                                      # (N, C)
    mp = jnp.pad(mean, ((0, 0), (pad, pad)))                        # (N, C+2p)
    y = sum(wf[j] * mp[:, j:j + c] for j in range(k))               # (N, C)
    gate = jax.nn.sigmoid(y)
    return x * gate[:, :, None, None]


if __name__ == "__main__":
    N, C, H, W = 4, 32, 16, 16
    k_size = 3

    key = jax.random.PRNGKey(0)
    kx, kw = jax.random.split(key)
    x = jax.random.normal(kx, (N, C, H, W), jnp.float32)            # NCHW
    conv_w = 0.5 * jax.random.normal(kw, (1, 1, k_size), jnp.float32)

    out = eca_forward(x, conv_w, k_size)
    out = jax.block_until_ready(out)
    assert out.shape == (N, C, H, W)

    ref = eca_forward_ref(x, conv_w)
    np.testing.assert_allclose(np.asarray(out), np.asarray(ref),
                               rtol=1e-4, atol=1e-4)
    print("KERNEL_OK")
</pallas_src>

<mosaic_0001>
module attributes {stable_mosaic.version = 11 : i64} {
  func.func @kernel(%arg0: i32, %arg1: memref<3xf32, #tpu.memory_space<smem>>, %arg2: memref<2x32x256xf32, #tpu.memory_space<vmem>>, %arg3: memref<2x32x256xf32, #tpu.memory_space<vmem>>, %arg4: memref<2x32x1xf32, #tpu.memory_space<vmem>>) attributes {dimension_semantics = [#tpu.dimension_semantics<parallel>], iteration_bounds = array<i64: 2>, scalar_prefetch = 0 : i64, scratch_operands = 1 : i64, tpu.core_type = #tpu.core_type<tc>, window_params = [{transform_indices = @transform_0, window_bounds = array<i64: 3>}, {transform_indices = @transform_1, window_bounds = array<i64: 2, 32, 256>}, {transform_indices = @transform_2, window_bounds = array<i64: 2, 32, 256>}]} {
    %c0 = arith.constant 0 : index
    %c0_0 = arith.constant 0 : index
    %c0_1 = arith.constant 0 : index
    %0 = vector.load %arg2[%c0, %c0_0, %c0_1] : memref<2x32x256xf32, #tpu.memory_space<vmem>>, vector<2x32x256xf32>
    %cst = arith.constant dense<0.000000e+00> : vector<2x32xf32>
    %1 = vector.multi_reduction <add>, %0, %cst [2] : vector<2x32x256xf32> to vector<2x32xf32>
    %2 = vector.shape_cast %1 : vector<2x32xf32> to vector<2x32x1xf32>
    %cst_2 = arith.constant 3.906250e-03 : f32
    %3 = vector.broadcast %cst_2 : f32 to vector<2x32x1xf32>
    %4 = arith.mulf %2, %3 : vector<2x32x1xf32>
    %5 = tpu.iota {dimensions = array<i32: 0>} : vector<32x1xi32>
    %6 = vector.extract_strided_slice %4 {offsets = [0, 0, 0], sizes = [1, 32, 1], strides = [1, 1, 1]} : vector<2x32x1xf32> to vector<1x32x1xf32>
    %7 = vector.shape_cast %6 : vector<1x32x1xf32> to vector<32x1xf32>
    %c1 = arith.constant 1 : index
    %8 = memref.load %arg1[%c1] : memref<3xf32, #tpu.memory_space<smem>>
    %9 = vector.broadcast %8 : f32 to vector<32x1xf32>
    %10 = arith.mulf %9, %7 : vector<32x1xf32>
    %c1_i32 = arith.constant 1 : i32
    %11 = tpu.dynamic_rotate %7 by %c1_i32 dim 0 : vector<32x1xf32>, i32 -> vector<32x1xf32>
    %c-1_i32 = arith.constant -1 : i32
    %12 = vector.broadcast %c-1_i32 : i32 to vector<32x1xi32>
    %13 = arith.addi %5, %12 : vector<32x1xi32>
    %c0_i32 = arith.constant 0 : i32
    %14 = vector.broadcast %c0_i32 : i32 to vector<32x1xi32>
    %15 = arith.cmpi sge, %13, %14 : vector<32x1xi32>
    %c-1_i32_3 = arith.constant -1 : i32
    %16 = vector.broadcast %c-1_i32_3 : i32 to vector<32x1xi32>
    %17 = arith.addi %5, %16 : vector<32x1xi32>
    %c32_i32 = arith.constant 32 : i32
    %18 = vector.broadcast %c32_i32 : i32 to vector<32x1xi32>
    %19 = arith.cmpi slt, %17, %18 : vector<32x1xi32>
    %20 = arith.andi %15, %19 : vector<32x1xi1>
    %c0_4 = arith.constant 0 : index
    %21 = memref.load %arg1[%c0_4] : memref<3xf32, #tpu.memory_space<smem>>
    %cst_5 = arith.constant 0.000000e+00 : f32
    %22 = vector.broadcast %cst_5 : f32 to vector<32x1xf32>
    %23 = arith.select %20, %11, %22 : vector<32x1xi1>, vector<32x1xf32>
    %24 = vector.broadcast %21 : f32 to vector<32x1xf32>
    %25 = arith.mulf %24, %23 : vector<32x1xf32>
    %26 = arith.addf %10, %25 : vector<32x1xf32>
    %c31_i32 = arith.constant 31 : i32
    %27 = tpu.dynamic_rotate %7 by %c31_i32 dim 0 : vector<32x1xf32>, i32 -> vector<32x1xf32>
    %c1_i32_6 = arith.constant 1 : i32
    %28 = vector.broadcast %c1_i32_6 : i32 to vector<32x1xi32>
    %29 = arith.addi %5, %28 : vector<32x1xi32>
    %c0_i32_7 = arith.constant 0 : i32
    %30 = vector.broadcast %c0_i32_7 : i32 to vector<32x1xi32>
    %31 = arith.cmpi sge, %29, %30 : vector<32x1xi32>
    %c1_i32_8 = arith.constant 1 : i32
    %32 = vector.broadcast %c1_i32_8 : i32 to vector<32x1xi32>
    %33 = arith.addi %5, %32 : vector<32x1xi32>
    %c32_i32_9 = arith.constant 32 : i32
    %34 = vector.broadcast %c32_i32_9 : i32 to vector<32x1xi32>
    %35 = arith.cmpi slt, %33, %34 : vector<32x1xi32>
    %36 = arith.andi %31, %35 : vector<32x1xi1>
    %c2 = arith.constant 2 : index
    %37 = memref.load %arg1[%c2] : memref<3xf32, #tpu.memory_space<smem>>
    %cst_10 = arith.constant 0.000000e+00 : f32
    %38 = vector.broadcast %cst_10 : f32 to vector<32x1xf32>
    %39 = arith.select %36, %27, %38 : vector<32x1xi1>, vector<32x1xf32>
    %40 = vector.broadcast %37 : f32 to vector<32x1xf32>
    %41 = arith.mulf %40, %39 : vector<32x1xf32>
    %42 = arith.addf %26, %41 : vector<32x1xf32>
    %43 = arith.negf %42 : vector<32x1xf32>
    %44 = math.exp %43 : vector<32x1xf32>
    %cst_11 = arith.constant 1.000000e+00 : f32
    %45 = vector.broadcast %cst_11 : f32 to vector<32x1xf32>
    %46 = arith.addf %45, %44 : vector<32x1xf32>
    %47 = arith.divf %45, %46 : vector<32x1xf32>
    %c0_12 = arith.constant 0 : index
    %c0_13 = arith.constant 0 : index
    %c0_14 = arith.constant 0 : index
    %48 = vector.load %arg4[%c0_12, %c0_13, %c0_14] : memref<2x32x1xf32, #tpu.memory_space<vmem>>, vector<1x32x1xf32>
    %49 = vector.shape_cast %48 : vector<1x32x1xf32> to vector<32x1xf32>
    %50 = vector.shape_cast %47 : vector<32x1xf32> to vector<1x32x1xf32>
    tpu.vector_store %arg4[%c0_12, %c0_13, %c0_14], %50 {strides = array<i32>} : memref<2x32x1xf32, #tpu.memory_space<vmem>>, vector<1x32x1xf32>,
    %51 = vector.extract_strided_slice %4 {offsets = [1, 0, 0], sizes = [1, 32, 1], strides = [1, 1, 1]} : vector<2x32x1xf32> to vector<1x32x1xf32>
    %52 = vector.shape_cast %51 : vector<1x32x1xf32> to vector<32x1xf32>
    %c1_15 = arith.constant 1 : index
    %53 = memref.load %arg1[%c1_15] : memref<3xf32, #tpu.memory_space<smem>>
    %54 = vector.broadcast %53 : f32 to vector<32x1xf32>
    %55 = arith.mulf %54, %52 : vector<32x1xf32>
    %c1_i32_16 = arith.constant 1 : i32
    %56 = tpu.dynamic_rotate %52 by %c1_i32_16 dim 0 : vector<32x1xf32>, i32 -> vector<32x1xf32>
    %c-1_i32_17 = arith.constant -1 : i32
    %57 = vector.broadcast %c-1_i32_17 : i32 to vector<32x1xi32>
    %58 = arith.addi %5, %57 : vector<32x1xi32>
    %c0_i32_18 = arith.constant 0 : i32
    %59 = vector.broadcast %c0_i32_18 : i32 to vector<32x1xi32>
    %60 = arith.cmpi sge, %58, %59 : vector<32x1xi32>
    %c-1_i32_19 = arith.constant -1 : i32
    %61 = vector.broadcast %c-1_i32_19 : i32 to vector<32x1xi32>
    %62 = arith.addi %5, %61 : vector<32x1xi32>
    %c32_i32_20 = arith.constant 32 : i32
    %63 = vector.broadcast %c32_i32_20 : i32 to vector<32x1xi32>
    %64 = arith.cmpi slt, %62, %63 : vector<32x1xi32>
    %65 = arith.andi %60, %64 : vector<32x1xi1>
    %c0_21 = arith.constant 0 : index
    %66 = memref.load %arg1[%c0_21] : memref<3xf32, #tpu.memory_space<smem>>
    %cst_22 = arith.constant 0.000000e+00 : f32
    %67 = vector.broadcast %cst_22 : f32 to vector<32x1xf32>
    %68 = arith.select %65, %56, %67 : vector<32x1xi1>, vector<32x1xf32>
    %69 = vector.broadcast %66 : f32 to vector<32x1xf32>
    %70 = arith.mulf %69, %68 : vector<32x1xf32>
    %71 = arith.addf %55, %70 : vector<32x1xf32>
    %c31_i32_23 = arith.constant 31 : i32
    %72 = tpu.dynamic_rotate %52 by %c31_i32_23 dim 0 : vector<32x1xf32>, i32 -> vector<32x1xf32>
    %c1_i32_24 = arith.constant 1 : i32
    %73 = vector.broadcast %c1_i32_24 : i32 to vector<32x1xi32>
    %74 = arith.addi %5, %73 : vector<32x1xi32>
    %c0_i32_25 = arith.constant 0 : i32
    %75 = vector.broadcast %c0_i32_25 : i32 to vector<32x1xi32>
    %76 = arith.cmpi sge, %74, %75 : vector<32x1xi32>
    %c1_i32_26 = arith.constant 1 : i32
    %77 = vector.broadcast %c1_i32_26 : i32 to vector<32x1xi32>
    %78 = arith.addi %5, %77 : vector<32x1xi32>
    %c32_i32_27 = arith.constant 32 : i32
    %79 = vector.broadcast %c32_i32_27 : i32 to vector<32x1xi32>
    %80 = arith.cmpi slt, %78, %79 : vector<32x1xi32>
    %81 = arith.andi %76, %80 : vector<32x1xi1>
    %c2_28 = arith.constant 2 : index
    %82 = memref.load %arg1[%c2_28] : memref<3xf32, #tpu.memory_space<smem>>
    %cst_29 = arith.constant 0.000000e+00 : f32
    %83 = vector.broadcast %cst_29 : f32 to vector<32x1xf32>
    %84 = arith.select %81, %72, %83 : vector<32x1xi1>, vector<32x1xf32>
    %85 = vector.broadcast %82 : f32 to vector<32x1xf32>
    %86 = arith.mulf %85, %84 : vector<32x1xf32>
    %87 = arith.addf %71, %86 : vector<32x1xf32>
    %88 = arith.negf %87 : vector<32x1xf32>
    %89 = math.exp %88 : vector<32x1xf32>
    %cst_30 = arith.constant 1.000000e+00 : f32
    %90 = vector.broadcast %cst_30 : f32 to vector<32x1xf32>
    %91 = arith.addf %90, %89 : vector<32x1xf32>
    %92 = arith.divf %90, %91 : vector<32x1xf32>
    %c1_31 = arith.constant 1 : index
    %c0_32 = arith.constant 0 : index
    %c0_33 = arith.constant 0 : index
    %93 = vector.load %arg4[%c1_31, %c0_32, %c0_33] : memref<2x32x1xf32, #tpu.memory_space<vmem>>, vector<1x32x1xf32>
    %94 = vector.shape_cast %93 : vector<1x32x1xf32> to vector<32x1xf32>
    %95 = vector.shape_cast %92 : vector<32x1xf32> to vector<1x32x1xf32>
    tpu.vector_store %arg4[%c1_31, %c0_32, %c0_33], %95 {strides = array<i32>} : memref<2x32x1xf32, #tpu.memory_space<vmem>>, vector<1x32x1xf32>,
    %c0_34 = arith.constant 0 : index
    %c0_35 = arith.constant 0 : index
    %c0_36 = arith.constant 0 : index
    %96 = vector.load %arg4[%c0_34, %c0_35, %c0_36] : memref<2x32x1xf32, #tpu.memory_space<vmem>>, vector<2x32x1xf32>
    %97 = vector.broadcast %96 : vector<2x32x1xf32> to vector<2x32x256xf32>
    %98 = arith.mulf %0, %97 : vector<2x32x256xf32>
    %c0_37 = arith.constant 0 : index
    %c0_38 = arith.constant 0 : index
    %c0_39 = arith.constant 0 : index
    %99 = vector.load %arg3[%c0_37, %c0_38, %c0_39] : memref<2x32x256xf32, #tpu.memory_space<vmem>>, vector<2x32x256xf32>
    tpu.vector_store %arg3[%c0_37, %c0_38, %c0_39], %98 {strides = array<i32>} : memref<2x32x256xf32, #tpu.memory_space<vmem>>, vector<2x32x256xf32>,
    return
  }
  func.func @transform_0(%arg0: i32) -> i32 {
    %c0_i32 = arith.constant 0 : i32
    %c0_i32_0 = arith.constant 0 : i32
    return %c0_i32 : i32
  }
  func.func @transform_1(%arg0: i32) -> (i32, i32, i32) {
    %c0_i32 = arith.constant 0 : i32
    %c0_i32_0 = arith.constant 0 : i32
    %c0_i32_1 = arith.constant 0 : i32
    return %arg0, %c0_i32, %c0_i32_0 : i32, i32, i32
  }
  func.func @transform_2(%arg0: i32) -> (i32, i32, i32) {
    %c0_i32 = arith.constant 0 : i32
    %c0_i32_0 = arith.constant 0 : i32
    %c0_i32_1 = arith.constant 0 : i32
    return %arg0, %c0_i32, %c0_i32_0 : i32, i32, i32
  }
}

</mosaic_0001>

<llo_original>
// kernel: tpu_custom_call.1
$region0: #{tpu_custom_call.1}
  #allocation0 [shape = 'u32[]', space=smem, size = 0x4, offset = 0x4, fixed_abs, tag = 'smem constant byte address 0x4 - core index']
  #allocation1 [shape = 'u32[144,128]{1,0:T(1,128)}', space=vmem, size = 0x12000, scoped, tag = 'internal scratch']
  #allocation2 [shape = 'f32[2,32,1]{2,1,0:T(8,128)}', space=vmem, size = 0x8000, scoped, tag = 'scratch operand']
  %s0 = inlined_call_operand.hbm [shape: f32[3], index: 0, kind: input, shape index: {}]
  %s1 = inlined_call_operand.hbm [shape: f32[4,32,256], index: 1, kind: input, shape index: {}]
  %s2 = inlined_call_operand.hbm [shape: f32[4,32,256], index: 2, kind: output, shape index: {}]
  %s3 = sld [smem:[#allocation0]]
  $region49: #{tpu_custom_call.1} parent=0
    _
  %s5 = ssub.s32 1, %s3
  %s6 = scalar_select 0, %s5, %s3
  $region1: #{tpu_custom_call.1} parent=0
    #allocation3 [shape = 'u8[512]{0}', space=smem, size = 0x200, scoped, tag = 'input window, operand 0, single buffered']
    #allocation4 [shape = 's32[2]{0}', space=sflag, size = 0x8, scoped, tag = 'scoped memory for tpu_custom_call.1']
    #allocation5 [shape = 's32[2]{0}', space=sflag, size = 0x8, scoped, tag = 'scoped memory for tpu_custom_call.1']
    #allocation6 [shape = 's32[2]{0}', space=sflag, size = 0x8, scoped, tag = 'scoped memory for tpu_custom_call.1']
    #allocation7 [shape = 'u8[131072]{0}', space=vmem, size = 0x20000, scoped, tag = 'input window, operand 1']
    #allocation8 [shape = 'u8[131072]{0}', space=vmem, size = 0x20000, scoped, tag = 'output window, operand 0']
    %7 = vsyncpa [#allocation6], 0
    %8 = vsyncpa [#allocation4], 0
    %s9 = scalar_lea.sflag [#allocation4], 1
    %10 = vsyncpa %s9, 0
    %11 = vsyncpa [#allocation5], 0
    %s12 = scalar_lea.sflag [#allocation5], 1
    %13 = vsyncpa %s12, 0
    loop: start=0, step=1, limit=4
    $region2: #{tpu_custom_call.1} parent=1 // loop_pre_header
      _
    $region3: #{tpu_custom_call.1} parent=1 // loop_header
      %s15 = sphi 0, %s19
      %p16 = scmp.ge.s32.totalorder %s15, 4
      %s23 = sphi 0, %s23
      %s25 = sphi 0, %s23
      %s26 = sphi 0, %s25
      %s40 = sphi 0, %s26
      %s46 = sphi 0, %s48
      %s49 = sphi 0, %s46
      %s50 = sphi 0, %s49
      %s66 = sphi 0, %s50
      %s72 = sphi 0, %s74
      %s75 = sphi 0, %s72
      %s76 = sphi 0, %s75
      %s92 = sphi 0, %s76
    $region4: #{tpu_custom_call.1} parent=1 // loop_header_branch
      %18 = sbr.rel (%p16) target = $region8
    $region5: #{tpu_custom_call.1} parent=1 // loop_body
      %s20 = ssub.s32 %s15, 1
      %s21 = ssub.s32 %s15, 2
      %s22 = sadd.s32 %s15, 1
      %s24 = sadd.s32 %s23, 1
      %p27 = scmp.eq.s32.totalorder %s15, 1
      %p28 = scmp.ne.s32.totalorder %s23, %s25
      %p29 = scmp.eq.s32.totalorder %s15, 0
      %p30 = por %p28, %p29
      %p31 = scmp.ne.s32.totalorder %s23, %s25
      %p32 = scmp.eq.s32.totalorder %s20, 1
      %p33 = por %p31, %p32
      %p34 = scmp.ne.s32.totalorder %s25, %s26
      %p35 = scmp.eq.s32.totalorder %s20, 0
      %p36 = por %p34, %p35
      %p37 = scmp.ne.s32.totalorder %s25, %s26
      %p38 = scmp.eq.s32.totalorder %s21, 1
      %p39 = por %p37, %p38
      %p41 = scmp.ne.s32.totalorder %s26, %s40
      %p42 = scmp.eq.s32.totalorder %s21, 0
      %p43 = por %p41, %p42
      %s44 = ssub.s32 %s15, %s22
      %p45 = scmp.eq.s32.totalorder %s44, 0
      %s47 = sadd.s32 %s46, 1
      %s48 = scalar_select %p45, %s46, %s47
      %p51 = pneg %p45
      %p52 = scmp.eq.s32.totalorder %s15, 1
      %p53 = por %p51, %p52
      %p54 = scmp.ne.s32.totalorder %s46, %s49
      %p55 = scmp.eq.s32.totalorder %s15, 0
      %p56 = por %p54, %p55
      %p57 = scmp.ne.s32.totalorder %s46, %s49
      %p58 = scmp.eq.s32.totalorder %s20, 1
      %p59 = por %p57, %p58
      %p60 = scmp.ne.s32.totalorder %s49, %s50
      %p61 = scmp.eq.s32.totalorder %s20, 0
      %p62 = por %p60, %p61
      %p63 = scmp.ne.s32.totalorder %s49, %s50
      %p64 = scmp.eq.s32.totalorder %s21, 1
      %p65 = por %p63, %p64
      %p67 = scmp.ne.s32.totalorder %s50, %s66
      %p68 = scmp.eq.s32.totalorder %s21, 0
      %p69 = por %p67, %p68
      %s70 = ssub.s32 %s15, %s22
      %p71 = scmp.eq.s32.totalorder %s70, 0
      %s73 = sadd.s32 %s72, 1
      %s74 = scalar_select %p71, %s72, %s73
      %p77 = pneg %p71
      %p78 = scmp.eq.s32.totalorder %s15, 1
      %p79 = por %p77, %p78
      %p80 = scmp.ne.s32.totalorder %s72, %s75
      %p81 = scmp.eq.s32.totalorder %s15, 0
      %p82 = por %p80, %p81
      %p83 = scmp.ne.s32.totalorder %s72, %s75
      %p84 = scmp.eq.s32.totalorder %s20, 1
      %p85 = por %p83, %p84
      %p86 = scmp.ne.s32.totalorder %s75, %s76
      %p87 = scmp.eq.s32.totalorder %s20, 0
      %p88 = por %p86, %p87
      %p89 = scmp.ne.s32.totalorder %s75, %s76
      %p90 = scmp.eq.s32.totalorder %s21, 1
      %p91 = por %p89, %p90
      %p93 = scmp.ne.s32.totalorder %s76, %s92
      %p94 = scmp.eq.s32.totalorder %s21, 0
      %p95 = por %p93, %p94
      %p96 = scmp.le.s32.totalorder 1, %s15
      %p97 = scmp.lt.s32.totalorder %s15, 3
      %p98 = pnand %p96, %p97
      %p99 = pneg %p98
      // Predicated region
      $region9: #{tpu_custom_call.1} parent=5 // pred_check
        _
      $region10: #{tpu_custom_call.1} parent=5 // pred_check_branch
        %101 = sbr.rel (%p98) target = $region12
      $region11: #{tpu_custom_call.1} parent=5 // pred_region
        %s102 = ssub.s32 %s15, 1
        // Predicated region
        $region13: #{tpu_custom_call.1} parent=11 // pred_check
          %p103 = pneg %p36
        $region14: #{tpu_custom_call.1} parent=11 // pred_check_branch
          %105 = sbr.rel (%p103) target = $region16
        $region15: #{tpu_custom_call.1} parent=11 // pred_region
          %s107 = ssub.s32 16, 16
          %108 = vsyncadd [#allocation6], %s107
          %111 = dma.hbm_to_smem %s0, 16, [#allocation3], [#allocation6]
        $region16: #{tpu_custom_call.1} parent=11 // pred_fallthru
          _
      $region12: #{tpu_custom_call.1} parent=5 // pred_fallthru
        _
      %p112 = scmp.lt.s32.totalorder %s15, 2
      // Predicated region
      $region17: #{tpu_custom_call.1} parent=5 // pred_check
        %p113 = pneg %p112
      $region18: #{tpu_custom_call.1} parent=5 // pred_check_branch
        %115 = sbr.rel (%p113) target = $region20
      $region19: #{tpu_custom_call.1} parent=5 // pred_region
        // Predicated region
        $region21: #{tpu_custom_call.1} parent=19 // pred_check
          %p116 = pneg %p56
        $region22: #{tpu_custom_call.1} parent=19 // pred_check_branch
          %118 = sbr.rel (%p116) target = $region24
        $region23: #{tpu_custom_call.1} parent=19 // pred_region
          %s119 = sand.u32 %s46, 1
          %s120 = scalar_lea.sflag [#allocation4], %s119
          %s121 = sand.u32 %s46, 1
          %s122 = smul.addr %s121, 128
          %s123 = scalar_lea.vmem [#allocation7], %s122
          %s124 = smul.u32 2, %s15
          %s126 = ssub.s32 2048, 2048
          %127 = vsyncadd %s120, %s126
          %s128 = smul.addr %s124, 8
          %s129 = smul.addr %s128, 128
          %s130 = scalar_lea.hbm %s1, %s129
          %s131 = sshll.u32 %s123, 4
          %s132 = int_to_ptr.vmem [resolvable:$true] %s131
          %137 = dma.hbm_to_vmem [thread:$0]  %s130, 2048, %s132, %s120, 256, 256, 16
        $region24: #{tpu_custom_call.1} parent=19 // pred_fallthru
          _
      $region20: #{tpu_custom_call.1} parent=5 // pred_fallthru
        _
      %p138 = scmp.le.s32.totalorder 1, %s15
      %p139 = scmp.lt.s32.totalorder %s15, 3
      %p140 = pnand %p138, %p139
      %p141 = pneg %p140
      // Predicated region
      $region25: #{tpu_custom_call.1} parent=5 // pred_check
        _
      $region26: #{tpu_custom_call.1} parent=5 // pred_check_branch
        %143 = sbr.rel (%p140) target = $region28
      $region27: #{tpu_custom_call.1} parent=5 // pred_region
        %s144 = ssub.s32 %s15, 1
        // Predicated region
        $region29: #{tpu_custom_call.1} parent=27 // pred_check
          %p145 = pneg %p36
        $region30: #{tpu_custom_call.1} parent=27 // pred_check_branch
          %147 = sbr.rel (%p145) target = $region32
        $region31: #{tpu_custom_call.1} parent=27 // pred_region
          %148 = dma.done [#allocation6], 16
        $region32: #{tpu_custom_call.1} parent=27 // pred_fallthru
          _
        %s149 = sand.u32 %s49, 1
        %s150 = scalar_lea.sflag [#allocation4], %s149
        %s151 = sand.u32 %s49, 1
        %s152 = smul.addr %s151, 128
        %s153 = scalar_lea.vmem [#allocation7], %s152
        // Predicated region
        $region33: #{tpu_custom_call.1} parent=27 // pred_check
          %p154 = pneg %p62
        $region34: #{tpu_custom_call.1} parent=27 // pred_check_branch
          %156 = sbr.rel (%p154) target = $region36
        $region35: #{tpu_custom_call.1} parent=27 // pred_region
          %157 = dma.done %s150, 2048
        $region36: #{tpu_custom_call.1} parent=27 // pred_fallthru
          _
        %158 = sfence
        %p159 = pneg %p36
        %p160 = pneg %p33
        %s161 = sand.u32 %s49, 1
        %s162 = scalar_lea.sflag [#allocation4], %s161
        %s163 = sand.u32 %s49, 1
        %s164 = smul.addr %s163, 128
        %s165 = scalar_lea.vmem [#allocation7], %s164
        %p166 = pneg %p62
        %p167 = pneg %p59
        %p168 = pneg %p88
        %p169 = pneg %p85
        %s170 = sand.u32 %s75, 1
        %s171 = scalar_lea.sflag [#allocation5], %s170
        %s172 = sand.u32 %s75, 1
        %s173 = smul.addr %s172, 128
        %s174 = scalar_lea.vmem [#allocation8], %s173
        %s175 = smul.u32 2, %s20
        %s176 = smul.u32 2, %s20
        %v177 = vld [vmem:[%s153] sm:$0xff]
        %v178 = vld [vmem:[%s153 + $0x8] sm:$0xff]
        %v179 = vld [vmem:[%s153 + $0x10] sm:$0xff]
        %v180 = vld [vmem:[%s153 + $0x18] sm:$0xff]
        %v181 = vld [vmem:[%s153 + $0x20] sm:$0xff]
        %v182 = vld [vmem:[%s153 + $0x28] sm:$0xff]
        %v183 = vld [vmem:[%s153 + $0x30] sm:$0xff]
        %v184 = vld [vmem:[%s153 + $0x38] sm:$0xff]
        %v185 = vld [vmem:[%s153 + $0x40] sm:$0xff]
        %v186 = vld [vmem:[%s153 + $0x48] sm:$0xff]
        %v187 = vld [vmem:[%s153 + $0x50] sm:$0xff]
        %v188 = vld [vmem:[%s153 + $0x58] sm:$0xff]
        %v189 = vld [vmem:[%s153 + $0x60] sm:$0xff]
        %v190 = vld [vmem:[%s153 + $0x68] sm:$0xff]
        %v191 = vld [vmem:[%s153 + $0x70] sm:$0xff]
        %v192 = vld [vmem:[%s153 + $0x78] sm:$0xff]
        %v193 = vadd.f32 %v177, %v178
        %194 = vadd.xlane.f32.xlu0 %v193
        %v195 = vpop.xlane.xlu0 %194
        %v196 = vadd.f32 %v179, %v180
        %197 = vadd.xlane.f32.xlu0 %v196
        %v198 = vpop.xlane.xlu0 %197
        %v199 = vadd.f32 %v181, %v182
        %200 = vadd.xlane.f32.xlu0 %v199
        %v201 = vpop.xlane.xlu0 %200
        %v202 = vadd.f32 %v183, %v184
        %203 = vadd.xlane.f32.xlu0 %v202
        %v204 = vpop.xlane.xlu0 %203
        %v205 = vadd.f32 %v185, %v186
        %206 = vadd.xlane.f32.xlu0 %v205
        %v207 = vpop.xlane.xlu0 %206
        %v208 = vadd.f32 %v187, %v188
        %209 = vadd.xlane.f32.xlu0 %v208
        %v210 = vpop.xlane.xlu0 %209
        %v211 = vadd.f32 %v189, %v190
        %212 = vadd.xlane.f32.xlu0 %v211
        %v213 = vpop.xlane.xlu0 %212
        %v214 = vadd.f32 %v191, %v192
        %215 = vadd.xlane.f32.xlu0 %v214
        %v216 = vpop.xlane.xlu0 %215
        %v217 = vmul.f32 %v195, 0.00390625
        %v218 = vmul.f32 %v198, 0.00390625
        %v219 = vmul.f32 %v201, 0.00390625
        %v220 = vmul.f32 %v204, 0.00390625
        %v221 = vmul.f32 %v207, 0.00390625
        %v222 = vmul.f32 %v210, 0.00390625
        %v223 = vmul.f32 %v213, 0.00390625
        %v224 = vmul.f32 %v216, 0.00390625
        %v225 = vlaneseq
        %v226 = vshrl.u32 %v225, 7
        %v227 = vadd.s32 %v226, 8
        %v228 = vadd.s32 %v226, 16
        %v229 = vadd.s32 %v226, 24
        %s230 = sld [smem:[#allocation3 + $0x1]]
        %v231 = vstv %s230
        %v232 = vmul.f32 %v231, %v217
        %v233 = vmul.f32 %v231, %v218
        %v234 = vmul.f32 %v231, %v219
        %v235 = vmul.f32 %v231, %v220
        %v236 = vrot.slane %v217, 7
        %v237 = vrot.slane %v218, 7
        %v238 = vrot.slane %v219, 7
        %v239 = vrot.slane %v220, 7
        %vm240 = vcmp.lt.s32.totalorder %v226, 1
        %v241 = vsel %vm240, %v238, %v239
        %v242 = vsel %vm240, %v237, %v238
        %v243 = vsel %vm240, %v236, %v237
        %v244 = vsel %vm240, %v239, %v236
        %v245 = vadd.s32 %v226, 4294967295
        %v246 = vadd.s32 %v227, 4294967295
        %v247 = vadd.s32 %v228, 4294967295
        %v248 = vadd.s32 %v229, 4294967295
        %vm249 = vcmp.ge.s32.totalorder %v245, 0
        %vm250 = vcmp.ge.s32.totalorder %v246, 0
        %vm251 = vcmp.ge.s32.totalorder %v247, 0
        %vm252 = vcmp.ge.s32.totalorder %v248, 0
        %vm253 = vcmp.lt.s32.totalorder %v245, 32
        %vm254 = vcmp.lt.s32.totalorder %v246, 32
        %vm255 = vcmp.lt.s32.totalorder %v247, 32
        %vm256 = vcmp.lt.s32.totalorder %v248, 32
        %vm257 = vmand %vm249, %vm253
        %vm258 = vmand %vm250, %vm254
        %vm259 = vmand %vm251, %vm255
        %vm260 = vmand %vm252, %vm256
        %s261 = sld [smem:[#allocation3]]
        %v262 = vsel %vm257, %v244, 0.0
        %v263 = vsel %vm258, %v243, 0.0
        %v264 = vsel %vm259, %v242, 0.0
        %v265 = vsel %vm260, %v241, 0.0
        %v266 = vstv %s261
        %v267 = vmul.f32 %v266, %v262
        %v268 = vmul.f32 %v266, %v263
        %v269 = vmul.f32 %v266, %v264
        %v270 = vmul.f32 %v266, %v265
        %v271 = vadd.f32 %v232, %v267
        %v272 = vadd.f32 %v233, %v268
        %v273 = vadd.f32 %v234, %v269
        %v274 = vadd.f32 %v235, %v270
        %v275 = vrot.slane %v217, 1
        %v276 = vrot.slane %v218, 1
        %v277 = vrot.slane %v219, 1
        %v278 = vrot.slane %v220, 1
        %vm279 = vcmp.lt.s32.totalorder %v226, 7
        %v280 = vsel %vm279, %v277, %v278
        %v281 = vsel %vm279, %v276, %v277
        %v282 = vsel %vm279, %v275, %v276
        %v283 = vsel %vm279, %v278, %v275
        %v284 = vadd.s32 %v226, 1
        %v285 = vadd.s32 %v227, 1
        %v286 = vadd.s32 %v228, 1
        %v287 = vadd.s32 %v229, 1
        %vm288 = vcmp.ge.s32.totalorder %v284, 0
        %vm289 = vcmp.ge.s32.totalorder %v285, 0
        %vm290 = vcmp.ge.s32.totalorder %v286, 0
        %vm291 = vcmp.ge.s32.totalorder %v287, 0
        %vm292 = vcmp.lt.s32.totalorder %v284, 32
        %vm293 = vcmp.lt.s32.totalorder %v285, 32
        %vm294 = vcmp.lt.s32.totalorder %v286, 32
        %vm295 = vcmp.lt.s32.totalorder %v287, 32
        %vm296 = vmand %vm288, %vm292
        %vm297 = vmand %vm289, %vm293
        %vm298 = vmand %vm290, %vm294
        %vm299 = vmand %vm291, %vm295
        %s300 = sld [smem:[#allocation3 + $0x2]]
        %v301 = vsel %vm296, %v282, 0.0
        %v302 = vsel %vm297, %v281, 0.0
        %v303 = vsel %vm298, %v280, 0.0
        %v304 = vsel %vm299, %v283, 0.0
        %v305 = vstv %s300
        %v306 = vmul.f32 %v305, %v301
        %v307 = vmul.f32 %v305, %v302
        %v308 = vmul.f32 %v305, %v303
        %v309 = vmul.f32 %v305, %v304
        %v310 = vadd.f32 %v271, %v306
        %v311 = vadd.f32 %v272, %v307
        %v312 = vadd.f32 %v273, %v308
        %v313 = vadd.f32 %v274, %v309
        %v314 = vxor.u32 %v310, 2147483648
        %v315 = vxor.u32 %v311, 2147483648
        %v316 = vxor.u32 %v312, 2147483648
        %v317 = vxor.u32 %v313, 2147483648
        %v318 = vmul.f32 %v314, 1.442695
        %v319 = vpow.pop %v318
        %v320 = vmul.f32 %v315, 1.442695
        %v321 = vpow.pop %v320
        %v322 = vmul.f32 %v316, 1.442695
        %v323 = vpow.pop %v322
        %v324 = vmul.f32 %v317, 1.442695
        %v325 = vpow.pop %v324
        %v326 = vadd.f32 %v319, 1.0
        %v327 = vadd.f32 %v321, 1.0
        %v328 = vadd.f32 %v323, 1.0
        %v329 = vadd.f32 %v325, 1.0
        %v330 = vrcp.pop %v326
        %v331 = vmul.f32 1.0, %v330
        %v332 = vrcp.pop %v327
        %v333 = vmul.f32 1.0, %v332
        %v334 = vrcp.pop %v328
        %v335 = vmul.f32 1.0, %v334
        %v336 = vrcp.pop %v329
        %v337 = vmul.f32 1.0, %v336
        %vm338 = vcmask 7168
        %339 = vst.msk [vmem:[#allocation2] sm:$0xff] %vm338, %v331
        %340 = vst.msk [vmem:[#allocation2 + $0x8] sm:$0xff] %vm338, %v333
        %341 = vst.msk [vmem:[#allocation2 + $0x10] sm:$0xff] %vm338, %v335
        %342 = vst.msk [vmem:[#allocation2 + $0x18] sm:$0xff] %vm338, %v337
        %s343 = sld [smem:[#allocation3 + $0x1]]
        %v344 = vstv %s343
        %v345 = vmul.f32 %v344, %v221
        %v346 = vmul.f32 %v344, %v222
        %v347 = vmul.f32 %v344, %v223
        %v348 = vmul.f32 %v344, %v224
        %v349 = vrot.slane %v221, 7
        %v350 = vrot.slane %v222, 7
        %v351 = vrot.slane %v223, 7
        %v352 = vrot.slane %v224, 7
        %v353 = vsel %vm240, %v351, %v352
        %v354 = vsel %vm240, %v350, %v351
        %v355 = vsel %vm240, %v349, %v350
        %v356 = vsel %vm240, %v352, %v349
        %s357 = sld [smem:[#allocation3]]
        %v358 = vsel %vm257, %v356, 0.0
        %v359 = vsel %vm258, %v355, 0.0
        %v360 = vsel %vm259, %v354, 0.0
        %v361 = vsel %vm260, %v353, 0.0
        %v362 = vstv %s357
        %v363 = vmul.f32 %v362, %v358
        %v364 = vmul.f32 %v362, %v359
        %v365 = vmul.f32 %v362, %v360
        %v366 = vmul.f32 %v362, %v361
        %v367 = vadd.f32 %v345, %v363
        %v368 = vadd.f32 %v346, %v364
        %v369 = vadd.f32 %v347, %v365
        %v370 = vadd.f32 %v348, %v366
        %v371 = vrot.slane %v221, 1
        %v372 = vrot.slane %v222, 1
        %v373 = vrot.slane %v223, 1
        %v374 = vrot.slane %v224, 1
        %v375 = vsel %vm279, %v373, %v374
        %v376 = vsel %vm279, %v372, %v373
        %v377 = vsel %vm279, %v371, %v372
        %v378 = vsel %vm279, %v374, %v371
        %s379 = sld [smem:[#allocation3 + $0x2]]
        %v380 = vsel %vm296, %v377, 0.0
        %v381 = vsel %vm297, %v376, 0.0
        %v382 = vsel %vm298, %v375, 0.0
        %v383 = vsel %vm299, %v378, 0.0
        %v384 = vstv %s379
        %v385 = vmul.f32 %v384, %v380
        %v386 = vmul.f32 %v384, %v381
        %v387 = vmul.f32 %v384, %v382
        %v388 = vmul.f32 %v384, %v383
        %v389 = vadd.f32 %v367, %v385
        %v390 = vadd.f32 %v368, %v386
        %v391 = vadd.f32 %v369, %v387
        %v392 = vadd.f32 %v370, %v388
        %v393 = vxor.u32 %v389, 2147483648
        %v394 = vxor.u32 %v390, 2147483648
        %v395 = vxor.u32 %v391, 2147483648
        %v396 = vxor.u32 %v392, 2147483648
        %v397 = vmul.f32 %v393, 1.442695
        %v398 = vpow.pop %v397
        %v399 = vmul.f32 %v394, 1.442695
        %v400 = vpow.pop %v399
        %v401 = vmul.f32 %v395, 1.442695
        %v402 = vpow.pop %v401
        %v403 = vmul.f32 %v396, 1.442695
        %v404 = vpow.pop %v403
        %v405 = vadd.f32 %v398, 1.0
        %v406 = vadd.f32 %v400, 1.0
        %v407 = vadd.f32 %v402, 1.0
        %v408 = vadd.f32 %v404, 1.0
        %v409 = vrcp.pop %v405
        %v410 = vmul.f32 1.0, %v409
        %v411 = vrcp.pop %v406
        %v412 = vmul.f32 1.0, %v411
        %v413 = vrcp.pop %v407
        %v414 = vmul.f32 1.0, %v413
        %v415 = vrcp.pop %v408
        %v416 = vmul.f32 1.0, %v415
        %s417 = scalar_lea.vmem [#allocation2], 32
        %418 = vst.msk [vmem:[%s417] sm:$0xff] %vm338, %v410
        %419 = vst.msk [vmem:[%s417 + $0x8] sm:$0xff] %vm338, %v412
        %420 = vst.msk [vmem:[%s417 + $0x10] sm:$0xff] %vm338, %v414
        %421 = vst.msk [vmem:[%s417 + $0x18] sm:$0xff] %vm338, %v416
        %v422 = vld [vmem:[#allocation2] sm:$0xff]
        %v423 = vld [vmem:[#allocation2 + $0x8] sm:$0xff]
        %v424 = vld [vmem:[#allocation2 + $0x10] sm:$0xff]
        %v425 = vld [vmem:[#allocation2 + $0x18] sm:$0xff]
        %v426 = vld [vmem:[#allocation2 + $0x20] sm:$0xff]
        %v427 = vld [vmem:[#allocation2 + $0x28] sm:$0xff]
        %v428 = vld [vmem:[#allocation2 + $0x30] sm:$0xff]
        %v429 = vld [vmem:[#allocation2 + $0x38] sm:$0xff]
        %431 = vset.pattern.permute.xlu0 0
        %432 = vperm.xlu0 %431, %v422
        %v433 = vpop.permute.xlu0 %432
        %436 = vset.pattern.permute.xlu0 0
        %437 = vperm.xlu0 %436, %v423
        %v438 = vpop.permute.xlu0 %437
        %441 = vset.pattern.permute.xlu0 0
        %442 = vperm.xlu0 %441, %v424
        %v443 = vpop.permute.xlu0 %442
        %446 = vset.pattern.permute.xlu0 0
        %447 = vperm.xlu0 %446, %v425
        %v448 = vpop.permute.xlu0 %447
        %451 = vset.pattern.permute.xlu0 0
        %452 = vperm.xlu0 %451, %v426
        %v453 = vpop.permute.xlu0 %452
        %456 = vset.pattern.permute.xlu0 0
        %457 = vperm.xlu0 %456, %v427
        %v458 = vpop.permute.xlu0 %457
        %461 = vset.pattern.permute.xlu0 0
        %462 = vperm.xlu0 %461, %v428
        %v463 = vpop.permute.xlu0 %462
        %466 = vset.pattern.permute.xlu0 0
        %467 = vperm.xlu0 %466, %v429
        %v468 = vpop.permute.xlu0 %467
        %v470 = vmul.f32 %v177, %v433
        %v471 = vmul.f32 %v178, %v433
        %v472 = vmul.f32 %v179, %v438
        %v473 = vmul.f32 %v180, %v438
        %v474 = vmul.f32 %v181, %v443
        %v475 = vmul.f32 %v182, %v443
        %v476 = vmul.f32 %v183, %v448
        %v477 = vmul.f32 %v184, %v448
        %v478 = vmul.f32 %v185, %v453
        %v479 = vmul.f32 %v186, %v453
        %v480 = vmul.f32 %v187, %v458
        %v481 = vmul.f32 %v188, %v458
        %v482 = vmul.f32 %v189, %v463
        %v483 = vmul.f32 %v190, %v463
        %v484 = vmul.f32 %v191, %v468
        %v485 = vmul.f32 %v192, %v468
        %486 = vst [vmem:[%s174] sm:$0xff] %v470
        %487 = vst [vmem:[%s174 + $0x8] sm:$0xff] %v471
        %488 = vst [vmem:[%s174 + $0x10] sm:$0xff] %v472
        %489 = vst [vmem:[%s174 + $0x18] sm:$0xff] %v473
        %490 = vst [vmem:[%s174 + $0x20] sm:$0xff] %v474
        %491 = vst [vmem:[%s174 + $0x28] sm:$0xff] %v475
        %492 = vst [vmem:[%s174 + $0x30] sm:$0xff] %v476
        %493 = vst [vmem:[%s174 + $0x38] sm:$0xff] %v477
        %494 = vst [vmem:[%s174 + $0x40] sm:$0xff] %v478
        %495 = vst [vmem:[%s174 + $0x48] sm:$0xff] %v479
        %496 = vst [vmem:[%s174 + $0x50] sm:$0xff] %v480
        %497 = vst [vmem:[%s174 + $0x58] sm:$0xff] %v481
        %498 = vst [vmem:[%s174 + $0x60] sm:$0xff] %v482
        %499 = vst [vmem:[%s174 + $0x68] sm:$0xff] %v483
        %500 = vst [vmem:[%s174 + $0x70] sm:$0xff] %v484
        %501 = vst [vmem:[%s174 + $0x78] sm:$0xff] %v485
        %s502 = sand.u32 %s75, 1
        %s503 = scalar_lea.sflag [#allocation5], %s502
        %s504 = sand.u32 %s75, 1
        %s505 = smul.addr %s504, 128
        %s506 = scalar_lea.vmem [#allocation8], %s505
        // Predicated region
        $region37: #{tpu_custom_call.1} parent=27 // pred_check
          %p507 = pneg %p85
        $region38: #{tpu_custom_call.1} parent=27 // pred_check_branch
          %509 = sbr.rel (%p507) target = $region40
        $region39: #{tpu_custom_call.1} parent=27 // pred_region
          %s510 = smul.u32 2, %s20
          %s512 = ssub.s32 2048, 2048
          %513 = vsyncadd %s503, %s512
          %s514 = smul.addr %s510, 8
          %s515 = smul.addr %s514, 128
          %s516 = scalar_lea.hbm %s2, %s515
          %s517 = sshll.u32 %s506, 4
          %s518 = int_to_ptr.vmem [resolvable:$true] %s517
          %523 = dma.vmem_to_hbm [thread:$0]  %s518, 2048, %s516, %s503, 256, 256, 16
        $region40: #{tpu_custom_call.1} parent=27 // pred_fallthru
          _
      $region28: #{tpu_custom_call.1} parent=5 // pred_fallthru
        _
      %p524 = scmp.le.s32.totalorder 2, %s15
      // Predicated region
      $region41: #{tpu_custom_call.1} parent=5 // pred_check
        %p525 = pneg %p524
      $region42: #{tpu_custom_call.1} parent=5 // pred_check_branch
        %527 = sbr.rel (%p525) target = $region44
      $region43: #{tpu_custom_call.1} parent=5 // pred_region
        %s528 = ssub.s32 %s15, 2
        // Predicated region
        $region45: #{tpu_custom_call.1} parent=43 // pred_check
          %p529 = pneg %p91
        $region46: #{tpu_custom_call.1} parent=43 // pred_check_branch
          %531 = sbr.rel (%p529) target = $region48
        $region47: #{tpu_custom_call.1} parent=43 // pred_region
          %s532 = sand.u32 %s76, 1
          %s533 = scalar_lea.sflag [#allocation5], %s532
          %s534 = sand.u32 %s76, 1
          %s535 = smul.addr %s534, 128
          %s536 = scalar_lea.vmem [#allocation8], %s535
          %537 = dma.done %s533, 2048
        $region48: #{tpu_custom_call.1} parent=43 // pred_fallthru
          _
      $region44: #{tpu_custom_call.1} parent=5 // pred_fallthru
        _
    $region6: #{tpu_custom_call.1} parent=1 // loop_footer
      %s19 = sadd.s32 1, %s15
    $region7: #{tpu_custom_call.1} parent=1 // loop_footer_branch
      %14 = sbr.rel target = $region3
    $region8: #{tpu_custom_call.1} parent=1 // loop_exit
      _
    %538 = vsyncpa [#allocation4], 1
    %s539 = scalar_lea.sflag [#allocation4], 1
    %540 = vsyncpa %s539, 1
    %541 = vsyncpa [#allocation5], 1
    %s542 = scalar_lea.sflag [#allocation5], 1
    %543 = vsyncpa %s542, 1
    %544 = vsyncpa [#allocation6], 1
    %s545 = scalar_lea.sflag [#allocation6], 1
    %546 = vsyncpa %s545, 1

</llo_original>
